<compile_context>
chip_gen: v7x
topology: tpu7x:2x2x1
jax: 0.10.0
libtpu: 0.0.40
codegen_flags: <defaults>
</compile_context>

<pallas_src>
import jax
import jax.numpy as jnp
from jax.experimental import pallas as pl
from jax.experimental.pallas import tpu as pltpu


# ----------------------------------------------------------------------------
# Kernel
# ----------------------------------------------------------------------------
def _make_kernel(epi_dtype):
    """Fused 3-layer MLP kernel; `epi_dtype` is the bias+ReLU epilogue dtype."""

    def kernel(x_ref, w1_ref, b1_ref, w2_ref, b2_ref, w3_ref, b3_ref, o_ref):
        # Layer 1: bf16 MXU matmul, f32 accumulate, epilogue in epi_dtype.
        h = jnp.dot(x_ref[...], w1_ref[...], preferred_element_type=jnp.float32)
        h = jnp.maximum(h.astype(epi_dtype) + b1_ref[...], 0.0)
        # Layer 2 (activation fed to the MXU in bf16).
        h = jnp.dot(h.astype(jnp.bfloat16), w2_ref[...],
                    preferred_element_type=jnp.float32)
        h = jnp.maximum(h.astype(epi_dtype) + b2_ref[...], 0.0)
        # Layer 3 (no activation); final bias add in f32, store in o_ref dtype.
        out = jnp.dot(h.astype(jnp.bfloat16), w3_ref[...],
                      preferred_element_type=jnp.float32)
        o_ref[...] = (out + b3_ref[...].astype(jnp.float32)).astype(o_ref.dtype)

    return kernel


# ----------------------------------------------------------------------------
# Helpers
# ----------------------------------------------------------------------------
def _round_up(x, m):
    return ((x + m - 1) // m) * m


def _pad2d(a, rows, cols):
    a = jnp.asarray(a)
    pr, pc = rows - a.shape[0], cols - a.shape[1]
    if pr == 0 and pc == 0:
        return a
    return jnp.pad(a, ((0, pr), (0, pc)))


def _tpu_generation_info():
    """Returns (vmem_capacity_bytes, mxu_dim, has_bf16_vpu) for the local TPU."""
    vmem_cap, mxu_dim, bf16_vpu = 64 << 20, 128, True   # conservative defaults
    try:
        kind = jax.devices()[0].device_kind.lower()
    except Exception:
        kind = ""
    if "v7" in kind:
        vmem_cap, mxu_dim, bf16_vpu = 64 << 20, 256, True
    elif "v6" in kind:
        vmem_cap, mxu_dim, bf16_vpu = 128 << 20, 256, True
    elif "v5" in kind:
        vmem_cap, mxu_dim = 128 << 20, 128
        bf16_vpu = ("lite" not in kind) and ("5e" not in kind)  # v5e: no bf16 VPU
    try:  # authoritative VMEM size when available
        vmem_cap = int(pltpu.get_tpu_info().vmem_capacity_bytes)
    except Exception:
        pass
    return vmem_cap, mxu_dim, bf16_vpu


def _vmem_needed_bytes(tb, in_pad, hid_pad, out_pad, weight_buffers,
                       epi_bytes, out_bytes):
    w = weight_buffers * (in_pad * hid_pad + hid_pad * hid_pad
                          + hid_pad * out_pad) * 2            # bf16 weights
    b = weight_buffers * (2 * hid_pad + out_pad) * epi_bytes  # biases
    io = 2 * tb * in_pad * 2 + 2 * tb * out_pad * out_bytes   # dbl-buffered tiles
    h = 2 * tb * hid_pad * 4                                  # f32 intermediates
    return w + b + io + h


def _choose_tb(B, in_pad, hid_pad, out_pad, epi_bytes, out_bytes, budget):
    if B <= 16:
        return _round_up(B, 8)                      # single tile
    if B < 64:
        tb = _round_up(pl.cdiv(B, 2), 16)           # 2 even grid steps
    else:
        cap = 1024 if B >= 4096 else 512            # big batches may use 1024
        tb = min(cap, _round_up(pl.cdiv(B, 4), 16))  # >= 4 grid steps
    # Keep the (conservative, double-buffered-weight) footprint within ~75%
    # of the generation's VMEM budget; otherwise halve the batch tile.
    while tb > 16 and _vmem_needed_bytes(tb, in_pad, hid_pad, out_pad, 2,
                                         epi_bytes, out_bytes) > 0.75 * budget:
        tb = max(16, _round_up(tb // 2, 16))
    return tb


def _single_buffer_weights_supported():
    """Probe whether this jax accepts pipeline_mode=pl.Buffered(1)."""
    try:
        pl.BlockSpec((8, 128), lambda i: (0, 0), pipeline_mode=pl.Buffered(1))
        return True
    except Exception:
        return False


def _is_pipeline_mode_error(e):
    if isinstance(e, (TypeError, NotImplementedError)):
        return True
    try:
        if isinstance(e, pltpu.LoweringException):
            return True
    except Exception:
        pass
    msg = str(e).lower()
    return ("pipeline_mode" in msg) or ("buffered" in msg) or ("buffer count" in msg)


# ----------------------------------------------------------------------------
# Parameter preparation (once, outside the per-call path)
# ----------------------------------------------------------------------------
def prepare_mlp_params(w1, b1, w2, b2, w3, b3):
    """Pad + cast weights once.  Weights are [in, out] (transpose of PyTorch)."""
    in_dim, hid = w1.shape
    out_dim = w3.shape[1]
    _, mxu_dim, bf16_vpu = _tpu_generation_info()
    lane_mult = max(128, mxu_dim)                    # 256 on v6e/v7x, 128 on v5e
    epi_dtype = jnp.bfloat16 if bf16_vpu else jnp.float32
    in_pad = _round_up(in_dim, lane_mult)
    hid_pad = _round_up(hid, lane_mult)
    out_pad = _round_up(out_dim, lane_mult)
    # TODO(synk): on v7x, fp8 weights (with per-tensor scales) would halve the
    # resident weight VMEM / HBM traffic; kept bf16 here for accuracy portability.
    return {
        "w1": _pad2d(w1, in_pad, hid_pad).astype(jnp.bfloat16),
        "b1": _pad2d(jnp.asarray(b1).reshape(1, -1), 1, hid_pad).astype(epi_dtype),
        "w2": _pad2d(w2, hid_pad, hid_pad).astype(jnp.bfloat16),
        "b2": _pad2d(jnp.asarray(b2).reshape(1, -1), 1, hid_pad).astype(epi_dtype),
        "w3": _pad2d(w3, hid_pad, out_pad).astype(jnp.bfloat16),
        "b3": _pad2d(jnp.asarray(b3).reshape(1, -1), 1, out_pad).astype(epi_dtype),
        "dims": (in_dim, hid, out_dim),
        "padded": (in_pad, hid_pad, out_pad),
        "epi_dtype": epi_dtype,
    }


# ----------------------------------------------------------------------------
# Forward
# ----------------------------------------------------------------------------
def simple_mlp_forward(x, params, *, tb=None, out_dtype=None):
    B, in_dim = x.shape
    d_in, d_hid, d_out = params["dims"]
    assert in_dim == d_in, "x feature dim does not match the prepared params"
    in_pad, hid_pad, out_pad = params["padded"]
    epi_dtype = params["epi_dtype"]
    out_dtype = out_dtype or x.dtype     # pass jnp.bfloat16 to halve writeback

    vmem_cap, _, _ = _tpu_generation_info()
    budget = max(vmem_cap - (8 << 20), 16 << 20)     # ~8 MiB compiler headroom
    epi_bytes = jnp.dtype(epi_dtype).itemsize
    out_bytes = jnp.dtype(out_dtype).itemsize

    if tb is None:
        tb = _choose_tb(B, in_pad, hid_pad, out_pad, epi_bytes, out_bytes, budget)
    tb = max(8, int(tb))
    Bp = _round_up(B, tb)            # no remainder tile -> no masked stores
    grid = (Bp // tb,)

    # x tile: bf16, lane-padded (skipped if the caller already prepared it).
    if x.dtype == jnp.bfloat16 and x.shape == (Bp, in_pad):
        xp = x
    else:
        xp = _pad2d(x, Bp, in_pad).astype(jnp.bfloat16)

    # VMEM limit budgeted for the *double-buffered* weight case so the
    # no-Buffered fallback below never exceeds it; clamped to the
    # generation-aware budget (stays below physical VMEM with headroom).
    needed = _vmem_needed_bytes(tb, in_pad, hid_pad, out_pad, 2,
                                epi_bytes, out_bytes)
    vmem_limit = int(min(max(needed + (4 << 20), 32 << 20), budget))
    # TODO(synk): if the resident weights alone approach `budget` (very large
    # hidden dims, esp. on 64 MiB v7x), add a grid axis tiling the hidden /
    # output N dim instead of keeping all three weight matrices resident.

    kernel = _make_kernel(epi_dtype)
    single_buf_ok = _single_buffer_weights_supported()

    def run(buffered_weights):
        def x_map(i):
            return (i, 0)

        def rep_map(i):
            return (0, 0)

        def w_spec(shape):
            if buffered_weights:
                # Block index never changes -> a single VMEM buffer suffices;
                # avoids pointlessly double-buffering the resident weights.
                return pl.BlockSpec(shape, rep_map, pipeline_mode=pl.Buffered(1))
            return pl.BlockSpec(shape, rep_map)

        return pl.pallas_call(
            kernel,
            out_shape=jax.ShapeDtypeStruct((Bp, out_pad), out_dtype),
            grid_spec=pltpu.PrefetchScalarGridSpec(
                num_scalar_prefetch=0,
                grid=grid,
                in_specs=[
                    pl.BlockSpec((tb, in_pad), x_map),   # x tile (pipelined)
                    w_spec((in_pad, hid_pad)),           # W1 (resident)
                    w_spec((1, hid_pad)),                # b1
                    w_spec((hid_pad, hid_pad)),          # W2
                    w_spec((1, hid_pad)),                # b2
                    w_spec((hid_pad, out_pad)),          # W3
                    w_spec((1, out_pad)),                # b3
                ],
                out_specs=pl.BlockSpec((tb, out_pad), x_map),
            ),
            compiler_params=pltpu.CompilerParams(
                dimension_semantics=("parallel",),  # batch tiles shard across TCs
                vmem_limit_bytes=vmem_limit,
            ),
        )(xp, params["w1"], params["b1"], params["w2"], params["b2"],
          params["w3"], params["b3"])

    if single_buf_ok:
        try:
            out_padded = run(True)
        except Exception as e:
            # Only retry for pipeline_mode/Buffered-specific rejections; the
            # VMEM limit above already covers double-buffered weights.
            if not _is_pipeline_mode_error(e):
                raise
            out_padded = run(False)
    else:
        out_padded = run(False)

    return out_padded[:B, :d_out].astype(out_dtype)


# ----------------------------------------------------------------------------
# Init + references
# ----------------------------------------------------------------------------
def init_linear(key, in_dim, out_dim, dtype=jnp.float32):
    # Mimics nn.Linear's uniform(-1/sqrt(in), 1/sqrt(in)); weight is [in, out].
    kw, kb = jax.random.split(key)
    bound = 1.0 / jnp.sqrt(jnp.asarray(in_dim, dtype))
    w = jax.random.uniform(kw, (in_dim, out_dim), dtype, -bound, bound)
    b = jax.random.uniform(kb, (1, out_dim), dtype, -bound, bound)
    return w, b


def reference_mlp(x, w1, b1, w2, b2, w3, b3):
    """Plain float32 reference (matches the PyTorch module numerics loosely)."""
    h = jnp.maximum(jnp.dot(x, w1) + b1, 0.0)
    h = jnp.maximum(jnp.dot(h, w2) + b2, 0.0)
    return jnp.dot(h, w3) + b3


def reference_mlp_kernel_math(x, w1, b1, w2, b2, w3, b3, epi_dtype):
    """Mirrors the kernel's dtype choreography (bf16 MXU, f32 acc, epi dtype)."""
    def dot(a, b):
        return jnp.dot(a.astype(jnp.bfloat16), b.astype(jnp.bfloat16),
                       preferred_element_type=jnp.float32)
    h = dot(x, w1)
    h = jnp.maximum(h.astype(epi_dtype) + b1.astype(epi_dtype), 0.0)
    h = dot(h, w2)
    h = jnp.maximum(h.astype(epi_dtype) + b2.astype(epi_dtype), 0.0)
    out = dot(h, w3)
    return out + b3.astype(epi_dtype).astype(jnp.float32)


# ----------------------------------------------------------------------------
# Demo / self-test
# ----------------------------------------------------------------------------
if __name__ == "__main__":
    key = jax.random.PRNGKey(0)
    k_x, k1, k2, k3 = jax.random.split(key, 4)

    # Small shapes consistent with the module; B=32 gives a 2-step grid.
    B, input_dim, hidden_dim, output_dim = 32, 16, 32, 16
    x = jax.random.normal(k_x, (B, input_dim), jnp.float32)

    w1, b1 = init_linear(k1, input_dim, hidden_dim)
    w2, b2 = init_linear(k2, hidden_dim, hidden_dim)
    w3, b3 = init_linear(k3, hidden_dim, output_dim)

    # Weight padding / casting happens once here, not per forward call.
    params = prepare_mlp_params(w1, b1, w2, b2, w3, b3)

    out = simple_mlp_forward(x, params)
    out = jax.block_until_ready(out)
    assert out.shape == (B, output_dim)
    assert out.dtype == jnp.float32

    # Tight check against a reference that mirrors the kernel's exact dtype
    # path; loose sanity check against the full-f32 reference.
    ref_match = reference_mlp_kernel_math(x, w1, b1, w2, b2, w3, b3,
                                          params["epi_dtype"])
    ref_f32 = reference_mlp(x, w1, b1, w2, b2, w3, b3)
    assert jnp.allclose(out, ref_match, atol=5e-3, rtol=5e-3)
    assert jnp.allclose(out, ref_f32, atol=1e-1, rtol=1e-1)

    print("KERNEL_OK")
</pallas_src>

<mosaic_0001>
module attributes {stable_mosaic.version = 11 : i64} {
  func.func @kernel(%arg0: i32, %arg1: memref<16x128xbf16, #tpu.memory_space<vmem>>, %arg2: memref<128x128xbf16, #tpu.memory_space<vmem>>, %arg3: memref<1x128xbf16, #tpu.memory_space<vmem>>, %arg4: memref<128x128xbf16, #tpu.memory_space<vmem>>, %arg5: memref<1x128xbf16, #tpu.memory_space<vmem>>, %arg6: memref<128x128xbf16, #tpu.memory_space<vmem>>, %arg7: memref<1x128xbf16, #tpu.memory_space<vmem>>, %arg8: memref<16x128xf32, #tpu.memory_space<vmem>>) attributes {dimension_semantics = [#tpu.dimension_semantics<parallel>], iteration_bounds = array<i64: 2>, scalar_prefetch = 0 : i64, scratch_operands = 0 : i64, tpu.core_type = #tpu.core_type<tc>, window_params = [{transform_indices = @transform_0, window_bounds = array<i64: 16, 128>}, {pipeline_mode = #tpu.pipeline_mode<synchronous>, transform_indices = @transform_1, window_bounds = array<i64: 128, 128>}, {pipeline_mode = #tpu.pipeline_mode<synchronous>, transform_indices = @transform_2, window_bounds = array<i64: 1, 128>}, {pipeline_mode = #tpu.pipeline_mode<synchronous>, transform_indices = @transform_3, window_bounds = array<i64: 128, 128>}, {pipeline_mode = #tpu.pipeline_mode<synchronous>, transform_indices = @transform_4, window_bounds = array<i64: 1, 128>}, {pipeline_mode = #tpu.pipeline_mode<synchronous>, transform_indices = @transform_5, window_bounds = array<i64: 128, 128>}, {pipeline_mode = #tpu.pipeline_mode<synchronous>, transform_indices = @transform_6, window_bounds = array<i64: 1, 128>}, {transform_indices = @transform_7, window_bounds = array<i64: 16, 128>}]} {
    %c0 = arith.constant 0 : index
    %c0_0 = arith.constant 0 : index
    %0 = vector.load %arg1[%c0, %c0_0] : memref<16x128xbf16, #tpu.memory_space<vmem>>, vector<16x128xbf16>
    %c0_1 = arith.constant 0 : index
    %c0_2 = arith.constant 0 : index
    %1 = vector.load %arg2[%c0_1, %c0_2] : memref<128x128xbf16, #tpu.memory_space<vmem>>, vector<128x128xbf16>
    %cst = arith.constant dense<0.000000e+00> : vector<16x128xf32>
    %2 = tpu.matmul %0, %1, %cst {dimension_numbers = #tpu.dot_dimension_numbers<[1], [0], [0], [1], [0, 0, 1, 1], [], []>} : vector<16x128xbf16>, vector<128x128xbf16>, vector<16x128xf32> -> vector<16x128xf32>
    %3 = arith.truncf %2 : vector<16x128xf32> to vector<16x128xbf16>
    %c0_3 = arith.constant 0 : index
    %c0_4 = arith.constant 0 : index
    %4 = vector.load %arg3[%c0_3, %c0_4] : memref<1x128xbf16, #tpu.memory_space<vmem>>, vector<1x128xbf16>
    %5 = vector.broadcast %4 : vector<1x128xbf16> to vector<16x128xbf16>
    %6 = arith.addf %3, %5 : vector<16x128xbf16>
    %cst_5 = arith.constant 0.000000e+00 : bf16
    %7 = vector.broadcast %cst_5 : bf16 to vector<16x128xbf16>
    %8 = arith.maximumf %6, %7 : vector<16x128xbf16>
    %c0_6 = arith.constant 0 : index
    %c0_7 = arith.constant 0 : index
    %9 = vector.load %arg4[%c0_6, %c0_7] : memref<128x128xbf16, #tpu.memory_space<vmem>>, vector<128x128xbf16>
    %cst_8 = arith.constant dense<0.000000e+00> : vector<16x128xf32>
    %10 = tpu.matmul %8, %9, %cst_8 {dimension_numbers = #tpu.dot_dimension_numbers<[1], [0], [0], [1], [0, 0, 1, 1], [], []>} : vector<16x128xbf16>, vector<128x128xbf16>, vector<16x128xf32> -> vector<16x128xf32>
    %11 = arith.truncf %10 : vector<16x128xf32> to vector<16x128xbf16>
    %c0_9 = arith.constant 0 : index
    %c0_10 = arith.constant 0 : index
    %12 = vector.load %arg5[%c0_9, %c0_10] : memref<1x128xbf16, #tpu.memory_space<vmem>>, vector<1x128xbf16>
    %13 = vector.broadcast %12 : vector<1x128xbf16> to vector<16x128xbf16>
    %14 = arith.addf %11, %13 : vector<16x128xbf16>
    %cst_11 = arith.constant 0.000000e+00 : bf16
    %15 = vector.broadcast %cst_11 : bf16 to vector<16x128xbf16>
    %16 = arith.maximumf %14, %15 : vector<16x128xbf16>
    %c0_12 = arith.constant 0 : index
    %c0_13 = arith.constant 0 : index
    %17 = vector.load %arg6[%c0_12, %c0_13] : memref<128x128xbf16, #tpu.memory_space<vmem>>, vector<128x128xbf16>
    %cst_14 = arith.constant dense<0.000000e+00> : vector<16x128xf32>
    %18 = tpu.matmul %16, %17, %cst_14 {dimension_numbers = #tpu.dot_dimension_numbers<[1], [0], [0], [1], [0, 0, 1, 1], [], []>} : vector<16x128xbf16>, vector<128x128xbf16>, vector<16x128xf32> -> vector<16x128xf32>
    %c0_15 = arith.constant 0 : index
    %c0_16 = arith.constant 0 : index
    %19 = vector.load %arg7[%c0_15, %c0_16] : memref<1x128xbf16, #tpu.memory_space<vmem>>, vector<1x128xbf16>
    %20 = arith.extf %19 : vector<1x128xbf16> to vector<1x128xf32>
    %21 = vector.broadcast %20 : vector<1x128xf32> to vector<16x128xf32>
    %22 = arith.addf %18, %21 : vector<16x128xf32>
    %c0_17 = arith.constant 0 : index
    %c0_18 = arith.constant 0 : index
    %23 = vector.load %arg8[%c0_17, %c0_18] : memref<16x128xf32, #tpu.memory_space<vmem>>, vector<16x128xf32>
    tpu.vector_store %arg8[%c0_17, %c0_18], %22 {strides = array<i32>} : memref<16x128xf32, #tpu.memory_space<vmem>>, vector<16x128xf32>,
    return
  }
  func.func @transform_0(%arg0: i32) -> (i32, i32) {
    %c0_i32 = arith.constant 0 : i32
    %c0_i32_0 = arith.constant 0 : i32
    return %arg0, %c0_i32 : i32, i32
  }
  func.func @transform_1(%arg0: i32) -> (i32, i32) {
    %c0_i32 = arith.constant 0 : i32
    %c0_i32_0 = arith.constant 0 : i32
    %c0_i32_1 = arith.constant 0 : i32
    return %c0_i32, %c0_i32_0 : i32, i32
  }
  func.func @transform_2(%arg0: i32) -> (i32, i32) {
    %c0_i32 = arith.constant 0 : i32
    %c0_i32_0 = arith.constant 0 : i32
    %c0_i32_1 = arith.constant 0 : i32
    return %c0_i32, %c0_i32_0 : i32, i32
  }
  func.func @transform_3(%arg0: i32) -> (i32, i32) {
    %c0_i32 = arith.constant 0 : i32
    %c0_i32_0 = arith.constant 0 : i32
    %c0_i32_1 = arith.constant 0 : i32
    return %c0_i32, %c0_i32_0 : i32, i32
  }
  func.func @transform_4(%arg0: i32) -> (i32, i32) {
    %c0_i32 = arith.constant 0 : i32
    %c0_i32_0 = arith.constant 0 : i32
    %c0_i32_1 = arith.constant 0 : i32
    return %c0_i32, %c0_i32_0 : i32, i32
  }
  func.func @transform_5(%arg0: i32) -> (i32, i32) {
    %c0_i32 = arith.constant 0 : i32
    %c0_i32_0 = arith.constant 0 : i32
    %c0_i32_1 = arith.constant 0 : i32
    return %c0_i32, %c0_i32_0 : i32, i32
  }
  func.func @transform_6(%arg0: i32) -> (i32, i32) {
    %c0_i32 = arith.constant 0 : i32
    %c0_i32_0 = arith.constant 0 : i32
    %c0_i32_1 = arith.constant 0 : i32
    return %c0_i32, %c0_i32_0 : i32, i32
  }
  func.func @transform_7(%arg0: i32) -> (i32, i32) {
    %c0_i32 = arith.constant 0 : i32
    %c0_i32_0 = arith.constant 0 : i32
    return %arg0, %c0_i32 : i32, i32
  }
}

</mosaic_0001>

<llo_original>
// kernel: tpu_custom_call.1
$region0: #{tpu_custom_call.1}
  #allocation0 [shape = 'u32[]', space=smem, size = 0x4, offset = 0x4, fixed_abs, tag = 'smem constant byte address 0x4 - core index']
  #allocation1 [shape = 'u32[144,128]{1,0:T(1,128)}', space=vmem, size = 0x12000, scoped, tag = 'internal scratch']
  %s0 = inlined_call_operand.hbm [shape: bf16[32,128], index: 0, kind: input, shape index: {}]
  %s1 = inlined_call_operand.hbm [shape: bf16[128,128], index: 1, kind: input, shape index: {}]
  %s2 = inlined_call_operand.vmem [shape: bf16[1,128], index: 2, kind: input, shape index: {}]
  %s3 = inlined_call_operand.hbm [shape: bf16[128,128], index: 3, kind: input, shape index: {}]
  %s4 = inlined_call_operand.vmem [shape: bf16[1,128], index: 4, kind: input, shape index: {}]
  %s5 = inlined_call_operand.hbm [shape: bf16[128,128], index: 5, kind: input, shape index: {}]
  %s6 = inlined_call_operand.vmem [shape: bf16[1,128], index: 6, kind: input, shape index: {}]
  %s7 = inlined_call_operand.hbm [shape: f32[32,128], index: 7, kind: output, shape index: {}]
  %s8 = sld [smem:[#allocation0]]
  $region77: #{tpu_custom_call.1} parent=0
    _
  %s10 = ssub.s32 1, %s8
  %s11 = scalar_select 0, %s10, %s8
  $region1: #{tpu_custom_call.1} parent=0
    #allocation2 [shape = 'u8[8192]{0}', space=vmem, size = 0x2000, scoped, tag = 'input window, operand 0']
    #allocation3 [shape = 's32[2]{0}', space=sflag, size = 0x8, scoped, tag = 'scoped memory for tpu_custom_call.1']
    #allocation4 [shape = 's32[2]{0}', space=sflag, size = 0x8, scoped, tag = 'scoped memory for tpu_custom_call.1']
    #allocation5 [shape = 'u8[32768]{0}', space=vmem, size = 0x8000, scoped, tag = 'input window, operand 1, single buffered']
    #allocation6 [shape = 's32[1]{0}', space=sflag, size = 0x4, scoped, tag = 'scoped memory for tpu_custom_call.1']
    #allocation7 [shape = 'u8[32768]{0}', space=vmem, size = 0x8000, scoped, tag = 'input window, operand 3, single buffered']
    #allocation8 [shape = 'u8[32768]{0}', space=vmem, size = 0x8000, scoped, tag = 'input window, operand 5, single buffered']
    #allocation9 [shape = 's32[1]{0}', space=sflag, size = 0x4, scoped, tag = 'scoped memory for tpu_custom_call.1']
    #allocation10 [shape = 'u8[16384]{0}', space=vmem, size = 0x4000, scoped, tag = 'output window, operand 0']
    %12 = vsyncpa [#allocation3], 0
    %s13 = scalar_lea.sflag [#allocation3], 1
    %14 = vsyncpa %s13, 0
    %15 = vsyncpa [#allocation6], 0
    %16 = vsyncpa [#allocation9], 0
    %17 = vsyncpa [#allocation4], 0
    %s18 = scalar_lea.sflag [#allocation4], 1
    %19 = vsyncpa %s18, 0
    loop: start=0, step=1, limit=4
    $region2: #{tpu_custom_call.1} parent=1 // loop_pre_header
      _
    $region3: #{tpu_custom_call.1} parent=1 // loop_header
      %s21 = sphi 0, %s25
      %p22 = scmp.ge.s32.totalorder %s21, 4
      %s31 = sphi 0, %s33
      %s34 = sphi 0, %s31
      %s35 = sphi 0, %s34
      %s51 = sphi 0, %s35
      %s55 = sphi 0, %s55
      %s57 = sphi 0, %s55
      %s58 = sphi 0, %s57
      %s72 = sphi 0, %s58
      %s76 = sphi 0, %s76
      %s78 = sphi 0, %s76
      %s79 = sphi 0, %s78
      %s93 = sphi 0, %s79
      %s97 = sphi 0, %s97
      %s99 = sphi 0, %s97
      %s100 = sphi 0, %s99
      %s114 = sphi 0, %s100
      %s118 = sphi 0, %s118
      %s120 = sphi 0, %s118
      %s121 = sphi 0, %s120
      %s135 = sphi 0, %s121
      %s139 = sphi 0, %s139
      %s141 = sphi 0, %s139
      %s142 = sphi 0, %s141
      %s156 = sphi 0, %s142
      %s160 = sphi 0, %s160
      %s162 = sphi 0, %s160
      %s163 = sphi 0, %s162
      %s177 = sphi 0, %s163
      %s183 = sphi 0, %s185
      %s186 = sphi 0, %s183
      %s187 = sphi 0, %s186
      %s203 = sphi 0, %s187
    $region4: #{tpu_custom_call.1} parent=1 // loop_header_branch
      %24 = sbr.rel (%p22) target = $region8
    $region5: #{tpu_custom_call.1} parent=1 // loop_body
      %s26 = ssub.s32 %s21, 1
      %s27 = ssub.s32 %s21, 2
      %s28 = sadd.s32 %s21, 1
      %s29 = ssub.s32 %s21, %s28
      %p30 = scmp.eq.s32.totalorder %s29, 0
      %s32 = sadd.s32 %s31, 1
      %s33 = scalar_select %p30, %s31, %s32
      %p36 = pneg %p30
      %p37 = scmp.eq.s32.totalorder %s21, 1
      %p38 = por %p36, %p37
      %p39 = scmp.ne.s32.totalorder %s31, %s34
      %p40 = scmp.eq.s32.totalorder %s21, 0
      %p41 = por %p39, %p40
      %p42 = scmp.ne.s32.totalorder %s31, %s34
      %p43 = scmp.eq.s32.totalorder %s26, 1
      %p44 = por %p42, %p43
      %p45 = scmp.ne.s32.totalorder %s34, %s35
      %p46 = scmp.eq.s32.totalorder %s26, 0
      %p47 = por %p45, %p46
      %p48 = scmp.ne.s32.totalorder %s34, %s35
      %p49 = scmp.eq.s32.totalorder %s27, 1
      %p50 = por %p48, %p49
      %p52 = scmp.ne.s32.totalorder %s35, %s51
      %p53 = scmp.eq.s32.totalorder %s27, 0
      %p54 = por %p52, %p53
      %s56 = sadd.s32 %s55, 1
      %p59 = scmp.eq.s32.totalorder %s21, 1
      %p60 = scmp.ne.s32.totalorder %s55, %s57
      %p61 = scmp.eq.s32.totalorder %s21, 0
      %p62 = por %p60, %p61
      %p63 = scmp.ne.s32.totalorder %s55, %s57
      %p64 = scmp.eq.s32.totalorder %s26, 1
      %p65 = por %p63, %p64
      %p66 = scmp.ne.s32.totalorder %s57, %s58
      %p67 = scmp.eq.s32.totalorder %s26, 0
      %p68 = por %p66, %p67
      %p69 = scmp.ne.s32.totalorder %s57, %s58
      %p70 = scmp.eq.s32.totalorder %s27, 1
      %p71 = por %p69, %p70
      %p73 = scmp.ne.s32.totalorder %s58, %s72
      %p74 = scmp.eq.s32.totalorder %s27, 0
      %p75 = por %p73, %p74
      %s77 = sadd.s32 %s76, 1
      %p80 = scmp.eq.s32.totalorder %s21, 1
      %p81 = scmp.ne.s32.totalorder %s76, %s78
      %p82 = scmp.eq.s32.totalorder %s21, 0
      %p83 = por %p81, %p82
      %p84 = scmp.ne.s32.totalorder %s76, %s78
      %p85 = scmp.eq.s32.totalorder %s26, 1
      %p86 = por %p84, %p85
      %p87 = scmp.ne.s32.totalorder %s78, %s79
      %p88 = scmp.eq.s32.totalorder %s26, 0
      %p89 = por %p87, %p88
      %p90 = scmp.ne.s32.totalorder %s78, %s79
      %p91 = scmp.eq.s32.totalorder %s27, 1
      %p92 = por %p90, %p91
      %p94 = scmp.ne.s32.totalorder %s79, %s93
      %p95 = scmp.eq.s32.totalorder %s27, 0
      %p96 = por %p94, %p95
      %s98 = sadd.s32 %s97, 1
      %p101 = scmp.eq.s32.totalorder %s21, 1
      %p102 = scmp.ne.s32.totalorder %s97, %s99
      %p103 = scmp.eq.s32.totalorder %s21, 0
      %p104 = por %p102, %p103
      %p105 = scmp.ne.s32.totalorder %s97, %s99
      %p106 = scmp.eq.s32.totalorder %s26, 1
      %p107 = por %p105, %p106
      %p108 = scmp.ne.s32.totalorder %s99, %s100
      %p109 = scmp.eq.s32.totalorder %s26, 0
      %p110 = por %p108, %p109
      %p111 = scmp.ne.s32.totalorder %s99, %s100
      %p112 = scmp.eq.s32.totalorder %s27, 1
      %p113 = por %p111, %p112
      %p115 = scmp.ne.s32.totalorder %s100, %s114
      %p116 = scmp.eq.s32.totalorder %s27, 0
      %p117 = por %p115, %p116
      %s119 = sadd.s32 %s118, 1
      %p122 = scmp.eq.s32.totalorder %s21, 1
      %p123 = scmp.ne.s32.totalorder %s118, %s120
      %p124 = scmp.eq.s32.totalorder %s21, 0
      %p125 = por %p123, %p124
      %p126 = scmp.ne.s32.totalorder %s118, %s120
      %p127 = scmp.eq.s32.totalorder %s26, 1
      %p128 = por %p126, %p127
      %p129 = scmp.ne.s32.totalorder %s120, %s121
      %p130 = scmp.eq.s32.totalorder %s26, 0
      %p131 = por %p129, %p130
      %p132 = scmp.ne.s32.totalorder %s120, %s121
      %p133 = scmp.eq.s32.totalorder %s27, 1
      %p134 = por %p132, %p133
      %p136 = scmp.ne.s32.totalorder %s121, %s135
      %p137 = scmp.eq.s32.totalorder %s27, 0
      %p138 = por %p136, %p137
      %s140 = sadd.s32 %s139, 1
      %p143 = scmp.eq.s32.totalorder %s21, 1
      %p144 = scmp.ne.s32.totalorder %s139, %s141
      %p145 = scmp.eq.s32.totalorder %s21, 0
      %p146 = por %p144, %p145
      %p147 = scmp.ne.s32.totalorder %s139, %s141
      %p148 = scmp.eq.s32.totalorder %s26, 1
      %p149 = por %p147, %p148
      %p150 = scmp.ne.s32.totalorder %s141, %s142
      %p151 = scmp.eq.s32.totalorder %s26, 0
      %p152 = por %p150, %p151
      %p153 = scmp.ne.s32.totalorder %s141, %s142
      %p154 = scmp.eq.s32.totalorder %s27, 1
      %p155 = por %p153, %p154
      %p157 = scmp.ne.s32.totalorder %s142, %s156
      %p158 = scmp.eq.s32.totalorder %s27, 0
      %p159 = por %p157, %p158
      %s161 = sadd.s32 %s160, 1
      %p164 = scmp.eq.s32.totalorder %s21, 1
      %p165 = scmp.ne.s32.totalorder %s160, %s162
      %p166 = scmp.eq.s32.totalorder %s21, 0
      %p167 = por %p165, %p166
      %p168 = scmp.ne.s32.totalorder %s160, %s162
      %p169 = scmp.eq.s32.totalorder %s26, 1
      %p170 = por %p168, %p169
      %p171 = scmp.ne.s32.totalorder %s162, %s163
      %p172 = scmp.eq.s32.totalorder %s26, 0
      %p173 = por %p171, %p172
      %p174 = scmp.ne.s32.totalorder %s162, %s163
      %p175 = scmp.eq.s32.totalorder %s27, 1
      %p176 = por %p174, %p175
      %p178 = scmp.ne.s32.totalorder %s163, %s177
      %p179 = scmp.eq.s32.totalorder %s27, 0
      %p180 = por %p178, %p179
      %s181 = ssub.s32 %s21, %s28
      %p182 = scmp.eq.s32.totalorder %s181, 0
      %s184 = sadd.s32 %s183, 1
      %s185 = scalar_select %p182, %s183, %s184
      %p188 = pneg %p182
      %p189 = scmp.eq.s32.totalorder %s21, 1
      %p190 = por %p188, %p189
      %p191 = scmp.ne.s32.totalorder %s183, %s186
      %p192 = scmp.eq.s32.totalorder %s21, 0
      %p193 = por %p191, %p192
      %p194 = scmp.ne.s32.totalorder %s183, %s186
      %p195 = scmp.eq.s32.totalorder %s26, 1
      %p196 = por %p194, %p195
      %p197 = scmp.ne.s32.totalorder %s186, %s187
      %p198 = scmp.eq.s32.totalorder %s26, 0
      %p199 = por %p197, %p198
      %p200 = scmp.ne.s32.totalorder %s186, %s187
      %p201 = scmp.eq.s32.totalorder %s27, 1
      %p202 = por %p200, %p201
      %p204 = scmp.ne.s32.totalorder %s187, %s203
      %p205 = scmp.eq.s32.totalorder %s27, 0
      %p206 = por %p204, %p205
      %p207 = scmp.le.s32.totalorder 1, %s21
      %p208 = scmp.lt.s32.totalorder %s21, 3
      %p209 = pnand %p207, %p208
      %p210 = pneg %p209
      // Predicated region
      $region9: #{tpu_custom_call.1} parent=5 // pred_check
        _
      $region10: #{tpu_custom_call.1} parent=5 // pred_check_branch
        %212 = sbr.rel (%p209) target = $region12
      $region11: #{tpu_custom_call.1} parent=5 // pred_region
        %s213 = ssub.s32 %s21, 1
        // Predicated region
        $region13: #{tpu_custom_call.1} parent=11 // pred_check
          %p214 = pneg %p68
        $region14: #{tpu_custom_call.1} parent=11 // pred_check_branch
          %216 = sbr.rel (%p214) target = $region16
        $region15: #{tpu_custom_call.1} parent=11 // pred_region
          %s218 = ssub.s32 1024, 1024
          %219 = vsyncadd [#allocation6], %s218
          %s220 = sshll.u32 [#allocation5], 4
          %s221 = int_to_ptr.vmem [resolvable:$true] %s220
          %226 = dma.hbm_to_vmem [thread:$0]  %s1, 1024, %s221, [#allocation6], 64, 64, 4
        $region16: #{tpu_custom_call.1} parent=11 // pred_fallthru
          _
        // Predicated region
        $region17: #{tpu_custom_call.1} parent=11 // pred_check
          %p227 = pneg %p89
        $region18: #{tpu_custom_call.1} parent=11 // pred_check_branch
          %229 = sbr.rel (%p227) target = $region20
        $region19: #{tpu_custom_call.1} parent=11 // pred_region
          _
        $region20: #{tpu_custom_call.1} parent=11 // pred_fallthru
          _
        // Predicated region
        $region21: #{tpu_custom_call.1} parent=11 // pred_check
          %p230 = pneg %p110
        $region22: #{tpu_custom_call.1} parent=11 // pred_check_branch
          %232 = sbr.rel (%p230) target = $region24
        $region23: #{tpu_custom_call.1} parent=11 // pred_region
          %s234 = ssub.s32 1024, 1024
          %235 = vsyncadd [#allocation6], %s234
          %s236 = sshll.u32 [#allocation7], 4
          %s237 = int_to_ptr.vmem [resolvable:$true] %s236
          %242 = dma.hbm_to_vmem [thread:$0]  %s3, 1024, %s237, [#allocation6], 64, 64, 4
        $region24: #{tpu_custom_call.1} parent=11 // pred_fallthru
          _
        // Predicated region
        $region25: #{tpu_custom_call.1} parent=11 // pred_check
          %p243 = pneg %p131
        $region26: #{tpu_custom_call.1} parent=11 // pred_check_branch
          %245 = sbr.rel (%p243) target = $region28
        $region27: #{tpu_custom_call.1} parent=11 // pred_region
          _
        $region28: #{tpu_custom_call.1} parent=11 // pred_fallthru
          _
        // Predicated region
        $region29: #{tpu_custom_call.1} parent=11 // pred_check
          %p246 = pneg %p152
        $region30: #{tpu_custom_call.1} parent=11 // pred_check_branch
          %248 = sbr.rel (%p246) target = $region32
        $region31: #{tpu_custom_call.1} parent=11 // pred_region
          %s250 = ssub.s32 1024, 1024
          %251 = vsyncadd [#allocation9], %s250
          %s252 = sshll.u32 [#allocation8], 4
          %s253 = int_to_ptr.vmem [resolvable:$true] %s252
          %258 = dma.hbm_to_vmem [thread:$0]  %s5, 1024, %s253, [#allocation9], 64, 64, 4
        $region32: #{tpu_custom_call.1} parent=11 // pred_fallthru
          _
        // Predicated region
        $region33: #{tpu_custom_call.1} parent=11 // pred_check
          %p259 = pneg %p173
        $region34: #{tpu_custom_call.1} parent=11 // pred_check_branch
          %261 = sbr.rel (%p259) target = $region36
        $region35: #{tpu_custom_call.1} parent=11 // pred_region
          _
        $region36: #{tpu_custom_call.1} parent=11 // pred_fallthru
          _
      $region12: #{tpu_custom_call.1} parent=5 // pred_fallthru
        _
      %p262 = scmp.lt.s32.totalorder %s21, 2
      // Predicated region
      $region37: #{tpu_custom_call.1} parent=5 // pred_check
        %p263 = pneg %p262
      $region38: #{tpu_custom_call.1} parent=5 // pred_check_branch
        %265 = sbr.rel (%p263) target = $region40
      $region39: #{tpu_custom_call.1} parent=5 // pred_region
        // Predicated region
        $region41: #{tpu_custom_call.1} parent=39 // pred_check
          %p266 = pneg %p41
        $region42: #{tpu_custom_call.1} parent=39 // pred_check_branch
          %268 = sbr.rel (%p266) target = $region44
        $region43: #{tpu_custom_call.1} parent=39 // pred_region
          %s269 = sand.u32 %s31, 1
          %s270 = scalar_lea.sflag [#allocation3], %s269
          %s271 = sand.u32 %s31, 1
          %s272 = smul.addr %s271, 8
          %s273 = scalar_lea.vmem [#allocation2], %s272
          %s274 = smul.u32 2, %s21
          %s276 = ssub.s32 128, 128
          %277 = vsyncadd %s270, %s276
          %s278 = smul.addr %s274, 64
          %s279 = scalar_lea.hbm %s0, %s278
          %s280 = sshll.u32 %s273, 4
          %s281 = int_to_ptr.vmem [resolvable:$true] %s280
          %286 = dma.hbm_to_vmem [thread:$0]  %s279, 128, %s281, %s270, 64, 64, 4
        $region44: #{tpu_custom_call.1} parent=39 // pred_fallthru
          _
      $region40: #{tpu_custom_call.1} parent=5 // pred_fallthru
        _
      %p287 = scmp.le.s32.totalorder 1, %s21
      %p288 = scmp.lt.s32.totalorder %s21, 3
      %p289 = pnand %p287, %p288
      %p290 = pneg %p289
      // Predicated region
      $region45: #{tpu_custom_call.1} parent=5 // pred_check
        _
      $region46: #{tpu_custom_call.1} parent=5 // pred_check_branch
        %292 = sbr.rel (%p289) target = $region48
      $region47: #{tpu_custom_call.1} parent=5 // pred_region
        %s293 = ssub.s32 %s21, 1
        %s294 = sand.u32 %s34, 1
        %s295 = scalar_lea.sflag [#allocation3], %s294
        %s296 = sand.u32 %s34, 1
        %s297 = smul.addr %s296, 8
        %s298 = scalar_lea.vmem [#allocation2], %s297
        // Predicated region
        $region49: #{tpu_custom_call.1} parent=47 // pred_check
          %p299 = pneg %p47
        $region50: #{tpu_custom_call.1} parent=47 // pred_check_branch
          %301 = sbr.rel (%p299) target = $region52
        $region51: #{tpu_custom_call.1} parent=47 // pred_region
          %302 = dma.done %s295, 128
        $region52: #{tpu_custom_call.1} parent=47 // pred_fallthru
          _
        // Predicated region
        $region53: #{tpu_custom_call.1} parent=47 // pred_check
          %p303 = pneg %p68
        $region54: #{tpu_custom_call.1} parent=47 // pred_check_branch
          %305 = sbr.rel (%p303) target = $region56
        $region55: #{tpu_custom_call.1} parent=47 // pred_region
          %306 = dma.done [#allocation6], 1024
        $region56: #{tpu_custom_call.1} parent=47 // pred_fallthru
          _
        // Predicated region
        $region57: #{tpu_custom_call.1} parent=47 // pred_check
          %p307 = pneg %p110
        $region58: #{tpu_custom_call.1} parent=47 // pred_check_branch
          %309 = sbr.rel (%p307) target = $region60
        $region59: #{tpu_custom_call.1} parent=47 // pred_region
          %310 = dma.done [#allocation6], 1024
        $region60: #{tpu_custom_call.1} parent=47 // pred_fallthru
          _
        // Predicated region
        $region61: #{tpu_custom_call.1} parent=47 // pred_check
          %p311 = pneg %p152
        $region62: #{tpu_custom_call.1} parent=47 // pred_check_branch
          %313 = sbr.rel (%p311) target = $region64
        $region63: #{tpu_custom_call.1} parent=47 // pred_region
          %314 = dma.done [#allocation9], 1024
        $region64: #{tpu_custom_call.1} parent=47 // pred_fallthru
          _
        %s315 = sand.u32 %s34, 1
        %s316 = scalar_lea.sflag [#allocation3], %s315
        %s317 = sand.u32 %s34, 1
        %s318 = smul.addr %s317, 8
        %s319 = scalar_lea.vmem [#allocation2], %s318
        %p320 = pneg %p47
        %p321 = pneg %p44
        %p322 = pneg %p68
        %p323 = pneg %p65
        %p324 = pneg %p89
        %p325 = pneg %p86
        %p326 = pneg %p110
        %p327 = pneg %p107
        %p328 = pneg %p131
        %p329 = pneg %p128
        %p330 = pneg %p152
        %p331 = pneg %p149
        %p332 = pneg %p173
        %p333 = pneg %p170
        %p334 = pneg %p199
        %p335 = pneg %p196
        %s336 = sand.u32 %s186, 1
        %s337 = scalar_lea.sflag [#allocation4], %s336
        %s338 = sand.u32 %s186, 1
        %s339 = smul.addr %s338, 16
        %s340 = scalar_lea.vmem [#allocation10], %s339
        %s341 = smul.u32 2, %s26
        %s342 = smul.u32 2, %s26
        %v344 = vld [vmem:[%s298] sm:$0xf]
        %v345 = vld [vmem:[%s298 + $0x4] sm:$0xf]
        %v346 = vld [vmem:[#allocation5] sm:$0xf]
        %v347 = vld [vmem:[#allocation5 + $0x4] sm:$0xf]
        %v348 = vld [vmem:[#allocation5 + $0x8] sm:$0xf]
        %v349 = vld [vmem:[#allocation5 + $0xc] sm:$0xf]
        %v350 = vld [vmem:[#allocation5 + $0x10] sm:$0xf]
        %v351 = vld [vmem:[#allocation5 + $0x14] sm:$0xf]
        %v352 = vld [vmem:[#allocation5 + $0x18] sm:$0xf]
        %v353 = vld [vmem:[#allocation5 + $0x1c] sm:$0xf]
        %v354 = vld [vmem:[#allocation5 + $0x20] sm:$0xf]
        %v355 = vld [vmem:[#allocation5 + $0x24] sm:$0xf]
        %v356 = vld [vmem:[#allocation5 + $0x28] sm:$0xf]
        %v357 = vld [vmem:[#allocation5 + $0x2c] sm:$0xf]
        %v358 = vld [vmem:[#allocation5 + $0x30] sm:$0xf]
        %v359 = vld [vmem:[#allocation5 + $0x34] sm:$0xf]
        %v360 = vld [vmem:[#allocation5 + $0x38] sm:$0xf]
        %v361 = vld [vmem:[#allocation5 + $0x3c] sm:$0xf]
        %v364 = vunpack.c.l.b16 %v344
        %v365 = vunpack.c.l.b16 %v345
        %v366 = vpack.c.b16 %v365, %v364
        %v384 = vunpack.c.l.b16 %v346
        %v385 = vunpack.c.l.b16 %v347
        %v386 = vunpack.c.l.b16 %v348
        %v387 = vunpack.c.l.b16 %v349
        %v388 = vunpack.c.l.b16 %v350
        %v389 = vunpack.c.l.b16 %v351
        %v390 = vunpack.c.l.b16 %v352
        %v391 = vunpack.c.l.b16 %v353
        %v392 = vunpack.c.l.b16 %v354
        %v393 = vunpack.c.l.b16 %v355
        %v394 = vunpack.c.l.b16 %v356
        %v395 = vunpack.c.l.b16 %v357
        %v396 = vunpack.c.l.b16 %v358
        %v397 = vunpack.c.l.b16 %v359
        %v398 = vunpack.c.l.b16 %v360
        %v399 = vunpack.c.l.b16 %v361
        %v400 = vpack.c.b16 %v385, %v384
        %v401 = vpack.c.b16 %v387, %v386
        %v402 = vpack.c.b16 %v389, %v388
        %v403 = vpack.c.b16 %v391, %v390
        %v404 = vpack.c.b16 %v393, %v392
        %v405 = vpack.c.b16 %v395, %v394
        %v406 = vpack.c.b16 %v397, %v396
        %v407 = vpack.c.b16 %v399, %v398
        %416 = vmatprep.subr.bf16.mxu0 0
        %417 = vmatpush1.bf16.msra.mxu0 %v400
        %418 = vmatprep.subr.bf16.mxu0 0
        %419 = vmatpush1.bf16.msra.mxu0 %v401
        %420 = vmatprep.subr.bf16.mxu0 0
        %421 = vmatpush1.bf16.msra.mxu0 %v402
        %422 = vmatprep.subr.bf16.mxu0 0
        %423 = vmatpush1.bf16.msra.mxu0 %v403
        %424 = vmatprep.subr.bf16.mxu0 0
        %425 = vmatpush1.bf16.msra.mxu0 %v404
        %426 = vmatprep.subr.bf16.mxu0 0
        %427 = vmatpush1.bf16.msra.mxu0 %v405
        %428 = vmatprep.subr.bf16.mxu0 0
        %429 = vmatpush1.bf16.msra.mxu0 %v406
        %430 = vmatprep.subr.bf16.mxu0 0
        %431 = vmatpush1.bf16.msra.mxu0 %v407
        %432 = vmatprep.subr.bf16.mxu0 0
        %433 = vmatpush1.bf16.msra.mxu0 0
        %434 = vmatprep.subr.bf16.mxu0 0
        %435 = vmatpush1.bf16.msra.mxu0 0
        %436 = vmatprep.subr.bf16.mxu0 0
        %437 = vmatpush1.bf16.msra.mxu0 0
        %438 = vmatprep.subr.bf16.mxu0 0
        %439 = vmatpush1.bf16.msra.mxu0 0
        %440 = vmatprep.subr.bf16.mxu0 0
        %441 = vmatpush1.bf16.msra.mxu0 0
        %442 = vmatprep.subr.bf16.mxu0 0
        %443 = vmatpush1.bf16.msra.mxu0 0
        %444 = vmatprep.subr.bf16.mxu0 0
        %445 = vmatpush1.bf16.msra.mxu0 0
        %446 = vmatprep.subr.bf16.mxu0 0
        %447 = vmatpush1.bf16.msra.mxu0 0
        %448 = vmatprep.mubr.bf16.mxu0 0
        %449 = vmatmul.mubr.bf16.gmra.mrb[0].mxu0 %v366
        %v450 = vpop.f32.mrb[0].mxu0
        %v451 = vadd.f32 0.0, %v450
        %v452 = vpop.f32.mrb[0].mxu0
        %v453 = vpop.f32.mrb[0].mxu0
        %v454 = vadd.f32 0.0, %v453
        %v455 = vpop.f32.mrb[0].mxu0
        %456 = vdwg.mxu0
        %v457 = vpack.c.bf16 %v454, %v451
        %v458 = vld [vmem:[%s2] sm:$0x1]
        %v460 = vpack.i.b16 %v458, %v458
        %v462 = vlaneseq
        %v463 = vshrl.u32 %v462, 7
        %v464 = vsub.s32 0, %v463
        %v465 = vrot.slane %v460, %v464
        %v466 = vadd.bf16 %v457, %v465
        %v467 = vmax.bf16 %v466, 0
        %v468 = vld [vmem:[#allocation7] sm:$0xf]
        %v469 = vld [vmem:[#allocation7 + $0x4] sm:$0xf]
        %v470 = vld [vmem:[#allocation7 + $0x8] sm:$0xf]
        %v471 = vld [vmem:[#allocation7 + $0xc] sm:$0xf]
        %v472 = vld [vmem:[#allocation7 + $0x10] sm:$0xf]
        %v473 = vld [vmem:[#allocation7 + $0x14] sm:$0xf]
        %v474 = vld [vmem:[#allocation7 + $0x18] sm:$0xf]
        %v475 = vld [vmem:[#allocation7 + $0x1c] sm:$0xf]
        %v476 = vld [vmem:[#allocation7 + $0x20] sm:$0xf]
        %v477 = vld [vmem:[#allocation7 + $0x24] sm:$0xf]
        %v478 = vld [vmem:[#allocation7 + $0x28] sm:$0xf]
        %v479 = vld [vmem:[#allocation7 + $0x2c] sm:$0xf]
        %v480 = vld [vmem:[#allocation7 + $0x30] sm:$0xf]
        %v481 = vld [vmem:[#allocation7 + $0x34] sm:$0xf]
        %v482 = vld [vmem:[#allocation7 + $0x38] sm:$0xf]
        %v483 = vld [vmem:[#allocation7 + $0x3c] sm:$0xf]
        %v500 = vunpack.c.l.b16 %v468
        %v501 = vunpack.c.l.b16 %v469
        %v502 = vunpack.c.l.b16 %v470
        %v503 = vunpack.c.l.b16 %v471
        %v504 = vunpack.c.l.b16 %v472
        %v505 = vunpack.c.l.b16 %v473
        %v506 = vunpack.c.l.b16 %v474
        %v507 = vunpack.c.l.b16 %v475
        %v508 = vunpack.c.l.b16 %v476
        %v509 = vunpack.c.l.b16 %v477
        %v510 = vunpack.c.l.b16 %v478
        %v511 = vunpack.c.l.b16 %v479
        %v512 = vunpack.c.l.b16 %v480
        %v513 = vunpack.c.l.b16 %v481
        %v514 = vunpack.c.l.b16 %v482
        %v515 = vunpack.c.l.b16 %v483
        %v516 = vpack.c.b16 %v501, %v500
        %v517 = vpack.c.b16 %v503, %v502
        %v518 = vpack.c.b16 %v505, %v504
        %v519 = vpack.c.b16 %v507, %v506
        %v520 = vpack.c.b16 %v509, %v508
        %v521 = vpack.c.b16 %v511, %v510
        %v522 = vpack.c.b16 %v513, %v512
        %v523 = vpack.c.b16 %v515, %v514
        %532 = vmatprep.subr.bf16.mxu0 0
        %533 = vmatpush1.bf16.msra.mxu0 %v516
        %534 = vmatprep.subr.bf16.mxu0 0
        %535 = vmatpush1.bf16.msra.mxu0 %v517
        %536 = vmatprep.subr.bf16.mxu0 0
        %537 = vmatpush1.bf16.msra.mxu0 %v518
        %538 = vmatprep.subr.bf16.mxu0 0
        %539 = vmatpush1.bf16.msra.mxu0 %v519
        %540 = vmatprep.subr.bf16.mxu0 0
        %541 = vmatpush1.bf16.msra.mxu0 %v520
        %542 = vmatprep.subr.bf16.mxu0 0
        %543 = vmatpush1.bf16.msra.mxu0 %v521
        %544 = vmatprep.subr.bf16.mxu0 0
        %545 = vmatpush1.bf16.msra.mxu0 %v522
        %546 = vmatprep.subr.bf16.mxu0 0
        %547 = vmatpush1.bf16.msra.mxu0 %v523
        %548 = vmatprep.subr.bf16.mxu0 0
        %549 = vmatpush1.bf16.msra.mxu0 0
        %550 = vmatprep.subr.bf16.mxu0 0
        %551 = vmatpush1.bf16.msra.mxu0 0
        %552 = vmatprep.subr.bf16.mxu0 0
        %553 = vmatpush1.bf16.msra.mxu0 0
        %554 = vmatprep.subr.bf16.mxu0 0
        %555 = vmatpush1.bf16.msra.mxu0 0
        %556 = vmatprep.subr.bf16.mxu0 0
        %557 = vmatpush1.bf16.msra.mxu0 0
        %558 = vmatprep.subr.bf16.mxu0 0
        %559 = vmatpush1.bf16.msra.mxu0 0
        %560 = vmatprep.subr.bf16.mxu0 0
        %561 = vmatpush1.bf16.msra.mxu0 0
        %562 = vmatprep.subr.bf16.mxu0 0
        %563 = vmatpush1.bf16.msra.mxu0 0
        %564 = vmatprep.mubr.bf16.mxu0 0
        %565 = vmatmul.mubr.bf16.gmra.mrb[0].mxu0 %v467
        %v566 = vpop.f32.mrb[0].mxu0
        %v567 = vadd.f32 0.0, %v566
        %v568 = vpop.f32.mrb[0].mxu0
        %v569 = vpop.f32.mrb[0].mxu0
        %v570 = vadd.f32 0.0, %v569
        %v571 = vpop.f32.mrb[0].mxu0
        %572 = vdwg.mxu0
        %v573 = vpack.c.bf16 %v570, %v567
        %v574 = vld [vmem:[%s4] sm:$0x1]
        %v576 = vpack.i.b16 %v574, %v574
        %v578 = vlaneseq
        %v579 = vshrl.u32 %v578, 7
        %v580 = vsub.s32 0, %v579
        %v581 = vrot.slane %v576, %v580
        %v582 = vadd.bf16 %v573, %v581
        %v583 = vmax.bf16 %v582, 0
        %v584 = vld [vmem:[#allocation8] sm:$0xf]
        %v585 = vld [vmem:[#allocation8 + $0x4] sm:$0xf]
        %v586 = vld [vmem:[#allocation8 + $0x8] sm:$0xf]
        %v587 = vld [vmem:[#allocation8 + $0xc] sm:$0xf]
        %v588 = vld [vmem:[#allocation8 + $0x10] sm:$0xf]
        %v589 = vld [vmem:[#allocation8 + $0x14] sm:$0xf]
        %v590 = vld [vmem:[#allocation8 + $0x18] sm:$0xf]
        %v591 = vld [vmem:[#allocation8 + $0x1c] sm:$0xf]
        %v592 = vld [vmem:[#allocation8 + $0x20] sm:$0xf]
        %v593 = vld [vmem:[#allocation8 + $0x24] sm:$0xf]
        %v594 = vld [vmem:[#allocation8 + $0x28] sm:$0xf]
        %v595 = vld [vmem:[#allocation8 + $0x2c] sm:$0xf]
        %v596 = vld [vmem:[#allocation8 + $0x30] sm:$0xf]
        %v597 = vld [vmem:[#allocation8 + $0x34] sm:$0xf]
        %v598 = vld [vmem:[#allocation8 + $0x38] sm:$0xf]
        %v599 = vld [vmem:[#allocation8 + $0x3c] sm:$0xf]
        %v600 = vld [vmem:[%s6] sm:$0x1]
        %v601 = vunpack.c.l.bf16 %v600
        %v602 = vlaneseq
        %v603 = vshrl.u32 %v602, 7
        %v604 = vsub.s32 0, %v603
        %v605 = vrot.slane %v601, %v604
        %v622 = vunpack.c.l.b16 %v584
        %v623 = vunpack.c.l.b16 %v585
        %v624 = vunpack.c.l.b16 %v586
        %v625 = vunpack.c.l.b16 %v587
        %v626 = vunpack.c.l.b16 %v588
        %v627 = vunpack.c.l.b16 %v589
        %v628 = vunpack.c.l.b16 %v590
        %v629 = vunpack.c.l.b16 %v591
        %v630 = vunpack.c.l.b16 %v592
        %v631 = vunpack.c.l.b16 %v593
        %v632 = vunpack.c.l.b16 %v594
        %v633 = vunpack.c.l.b16 %v595
        %v634 = vunpack.c.l.b16 %v596
        %v635 = vunpack.c.l.b16 %v597
        %v636 = vunpack.c.l.b16 %v598
        %v637 = vunpack.c.l.b16 %v599
        %v638 = vpack.c.b16 %v623, %v622
        %v639 = vpack.c.b16 %v625, %v624
        %v640 = vpack.c.b16 %v627, %v626
        %v641 = vpack.c.b16 %v629, %v628
        %v642 = vpack.c.b16 %v631, %v630
        %v643 = vpack.c.b16 %v633, %v632
        %v644 = vpack.c.b16 %v635, %v634
        %v645 = vpack.c.b16 %v637, %v636
        %654 = vmatprep.subr.bf16.mxu0 0
        %655 = vmatpush1.bf16.msra.mxu0 %v638
        %656 = vmatprep.subr.bf16.mxu0 0
        %657 = vmatpush1.bf16.msra.mxu0 %v639
        %658 = vmatprep.subr.bf16.mxu0 0
        %659 = vmatpush1.bf16.msra.mxu0 %v640
        %660 = vmatprep.subr.bf16.mxu0 0
        %661 = vmatpush1.bf16.msra.mxu0 %v641
        %662 = vmatprep.subr.bf16.mxu0 0
        %663 = vmatpush1.bf16.msra.mxu0 %v642
        %664 = vmatprep.subr.bf16.mxu0 0
        %665 = vmatpush1.bf16.msra.mxu0 %v643
        %666 = vmatprep.subr.bf16.mxu0 0
        %667 = vmatpush1.bf16.msra.mxu0 %v644
        %668 = vmatprep.subr.bf16.mxu0 0
        %669 = vmatpush1.bf16.msra.mxu0 %v645
        %670 = vmatprep.subr.bf16.mxu0 0
        %671 = vmatpush1.bf16.msra.mxu0 0
        %672 = vmatprep.subr.bf16.mxu0 0
        %673 = vmatpush1.bf16.msra.mxu0 0
        %674 = vmatprep.subr.bf16.mxu0 0
        %675 = vmatpush1.bf16.msra.mxu0 0
        %676 = vmatprep.subr.bf16.mxu0 0
        %677 = vmatpush1.bf16.msra.mxu0 0
        %678 = vmatprep.subr.bf16.mxu0 0
        %679 = vmatpush1.bf16.msra.mxu0 0
        %680 = vmatprep.subr.bf16.mxu0 0
        %681 = vmatpush1.bf16.msra.mxu0 0
        %682 = vmatprep.subr.bf16.mxu0 0
        %683 = vmatpush1.bf16.msra.mxu0 0
        %684 = vmatprep.subr.bf16.mxu0 0
        %685 = vmatpush1.bf16.msra.mxu0 0
        %686 = vmatprep.mubr.bf16.mxu0 0
        %687 = vmatmul.mubr.bf16.gmra.mrb[0].mxu0 %v583
        %v688 = vpop.f32.mrb[0].mxu0
        %v689 = vadd.f32 %v605, %v688
        %v690 = vpop.f32.mrb[0].mxu0
        %v691 = vpop.f32.mrb[0].mxu0
        %v692 = vadd.f32 %v605, %v691
        %v693 = vpop.f32.mrb[0].mxu0
        %694 = vdwg.mxu0
        %695 = vst [vmem:[%s340] sm:$0xff] %v689
        %696 = vst [vmem:[%s340 + $0x8] sm:$0xff] %v692
        %s697 = sand.u32 %s186, 1
        %s698 = scalar_lea.sflag [#allocation4], %s697
        %s699 = sand.u32 %s186, 1
        %s700 = smul.addr %s699, 16
        %s701 = scalar_lea.vmem [#allocation10], %s700
        // Predicated region
        $region65: #{tpu_custom_call.1} parent=47 // pred_check
          %p702 = pneg %p196
        $region66: #{tpu_custom_call.1} parent=47 // pred_check_branch
          %704 = sbr.rel (%p702) target = $region68
        $region67: #{tpu_custom_call.1} parent=47 // pred_region
          %s705 = smul.u32 2, %s26
          %s707 = ssub.s32 256, 256
          %708 = vsyncadd %s698, %s707
          %s709 = smul.addr %s705, 128
          %s710 = scalar_lea.hbm %s7, %s709
          %s711 = sshll.u32 %s701, 4
          %s712 = int_to_ptr.vmem [resolvable:$true] %s711
          %717 = dma.vmem_to_hbm [thread:$0]  %s712, 256, %s710, %s698, 128, 128, 8
        $region68: #{tpu_custom_call.1} parent=47 // pred_fallthru
          _
      $region48: #{tpu_custom_call.1} parent=5 // pred_fallthru
        _
      %p718 = scmp.le.s32.totalorder 2, %s21
      // Predicated region
      $region69: #{tpu_custom_call.1} parent=5 // pred_check
        %p719 = pneg %p718
      $region70: #{tpu_custom_call.1} parent=5 // pred_check_branch
        %721 = sbr.rel (%p719) target = $region72
      $region71: #{tpu_custom_call.1} parent=5 // pred_region
        %s722 = ssub.s32 %s21, 2
        // Predicated region
        $region73: #{tpu_custom_call.1} parent=71 // pred_check
          %p723 = pneg %p202
        $region74: #{tpu_custom_call.1} parent=71 // pred_check_branch
          %725 = sbr.rel (%p723) target = $region76
        $region75: #{tpu_custom_call.1} parent=71 // pred_region
          %s726 = sand.u32 %s187, 1
          %s727 = scalar_lea.sflag [#allocation4], %s726
          %s728 = sand.u32 %s187, 1
          %s729 = smul.addr %s728, 16
          %s730 = scalar_lea.vmem [#allocation10], %s729
          %731 = dma.done %s727, 256
        $region76: #{tpu_custom_call.1} parent=71 // pred_fallthru
          _
      $region72: #{tpu_custom_call.1} parent=5 // pred_fallthru
        _
    $region6: #{tpu_custom_call.1} parent=1 // loop_footer
      %s25 = sadd.s32 1, %s21
    $region7: #{tpu_custom_call.1} parent=1 // loop_footer_branch
      %20 = sbr.rel target = $region3
    $region8: #{tpu_custom_call.1} parent=1 // loop_exit
      _
    %732 = vsyncpa [#allocation3], 1
    %s733 = scalar_lea.sflag [#allocation3], 1
    %734 = vsyncpa %s733, 1
    %735 = vsyncpa [#allocation6], 1
    %736 = vsyncpa [#allocation9], 1
    %737 = vsyncpa [#allocation4], 1
    %s738 = scalar_lea.sflag [#allocation4], 1
    %739 = vsyncpa %s738, 1

</llo_original>
